<compile_context>
chip_gen: v5e
topology: v5e:2x2
jax: 0.10.0
libtpu: 0.0.40
codegen_flags: <defaults>
</compile_context>

<pallas_src>
import functools

import jax
import jax.numpy as jnp
import numpy as np
from jax.experimental import pallas as pl
from jax.experimental.pallas import tpu as pltpu


# ------------------------- FSQ static constants (numpy) ------------------------
def _fsq_constants_np(levels, eps=1e-3):
    lv = np.asarray(levels, np.float64)
    half_l = ((lv - 1.0) * (1.0 + eps) / 2.0).astype(np.float32)
    offset = np.where(np.asarray(levels, np.int64) % 2 == 0, 0.5, 0.0).astype(np.float32)
    shift = np.arctanh(offset / half_l).astype(np.float32)
    half_w = (np.asarray(levels, np.int64) // 2).astype(np.float32)
    basis = np.cumprod(np.concatenate([[1.0], lv[:-1]])).astype(np.float32)
    return shift, half_l, offset, half_w, basis


def _round_up(a, b):
    return ((a + b - 1) // b) * b


# ------------------------------- Pallas kernel ----------------------------------
def _vqvae_kernel(x_ref, w1_ref, b1_ref, w2_ref, b2_ref, fsq_ref,
                  w3a_ref, b3a_ref, w4a_ref, b4a_ref, out_ref):
    """One batch tile: encoder MLP -> FSQ quantize -> fused decoder + ids -> packed slab.

    All constants arrive as inputs (no captured arrays).  Output slab lanes:
      [0:d_out) dec | [q0:q0+Z) codes | [ids0:ids0+z_layers) ids | rest 0
    """
    f32, bf16 = jnp.float32, jnp.bfloat16

    # ---- encoder MLP (bf16 MXU operands, f32 accumulation, f32 elementwise) ----
    h1 = jnp.dot(x_ref[...], w1_ref[...], preferred_element_type=f32) + b1_ref[...]
    h1 = jnp.maximum(h1, 0.0)
    # FSQ tanh-shift is folded into b2, so z here is already (logits + shift).
    z = jnp.dot(h1.astype(bf16), w2_ref[...], preferred_element_type=f32) + b2_ref[...]

    # ---- FSQ quantization (f32; padding lanes produce exactly 0) ----
    fsq = fsq_ref[...]                 # (3, slab_w): [half_l | offset | 1/half_width]
    half_l = fsq[0:1, :]
    offset = fsq[1:2, :]
    inv_hw = fsq[2:3, :]
    q = jnp.round(jnp.tanh(z) * half_l - offset)   # exact small integers (0 on pad lanes)
    codes = q * inv_hw                              # normalized codes, f32

    # ---- fused decoder layer 1 + id selection (single bf16 matmul) ----
    # w3a rows q0:q0+Z hold w3 * (1/half_width) into cols [0:H) and basis-scaled
    # selection into id cols; b3a holds b3 and the id offset sum(half_w*basis).
    r1 = jnp.dot(q.astype(bf16), w3a_ref[...], preferred_element_type=f32) + b3a_ref[...]
    h2 = jnp.maximum(r1, 0.0)          # relu is a no-op on id lanes (ids >= 0)

    # ---- fused decoder layer 2: dec into [0:d_out), ids pass through identity cols ----
    out = jnp.dot(h2.astype(bf16), w4a_ref[...], preferred_element_type=f32) + b4a_ref[...]
    out_ref[...] = out + codes         # codes occupy disjoint (otherwise-zero) lanes


# ----------------------- one-time weight padding / fusion ---------------------------
def prepare_vqvae_params(params, *, levels, z_layers):
    """Build the padded / fused kernel weights once (hoist out of the hot path)."""
    w1, b1, w2, b2, w3, b3, w4, b4 = params
    z_dim = len(levels)
    Z = z_layers * z_dim
    d_in, H = w1.shape
    d_out = w4.shape[1]
    assert w2.shape == (H, Z) and w3.shape == (Z, H)

    q0 = d_out
    ids0 = d_out + Z
    slab_w = max(128, _round_up(d_out + Z + z_layers, 128))

    shift, half_l, offset, half_w, basis = _fsq_constants_np(levels)
    inv_hw = (1.0 / half_w).astype(np.float32)
    tile = lambda v: np.tile(v.astype(np.float32), z_layers)

    f32, bf16 = jnp.float32, jnp.bfloat16

    # FSQ per-lane constants; pad lanes (half_l=offset=inv=0) make q=codes=0 there.
    fsqc = np.zeros((3, slab_w), np.float32)
    fsqc[0, q0:q0 + Z] = tile(half_l)
    fsqc[1, q0:q0 + Z] = tile(offset)
    fsqc[2, q0:q0 + Z] = tile(inv_hw)

    # encoder
    w1b = w1.astype(bf16)
    b1r = b1.astype(f32).reshape(1, H)
    w2p = jnp.zeros((H, slab_w), f32).at[:, q0:q0 + Z].set(w2).astype(bf16)
    shift_t = jnp.asarray(tile(shift))[None, :]
    b2p = jnp.zeros((1, slab_w), f32).at[:, q0:q0 + Z].set(
        b2.astype(f32).reshape(1, Z) + shift_t)

    # fused decoder layer-1 weight (consumes q directly) + basis-scaled id selection
    w3a = np.zeros((slab_w, slab_w), np.float32)
    w3a[q0:q0 + Z, 0:H] = np.asarray(w3, np.float32) * tile(inv_hw)[:, None]
    for l in range(z_layers):
        for d in range(z_dim):
            w3a[q0 + l * z_dim + d, ids0 + l] = basis[d]
    b3a = np.zeros((1, slab_w), np.float32)
    b3a[0, 0:H] = np.asarray(b3, np.float32).reshape(-1)
    b3a[0, ids0:ids0 + z_layers] = float(np.sum(half_w * basis))   # = 124 for (8,6,5)

    # fused decoder layer-2 weight: w4 into dec lanes, identity columns for ids
    w4a = np.zeros((slab_w, slab_w), np.float32)
    w4a[0:H, 0:d_out] = np.asarray(w4, np.float32)
    for l in range(z_layers):
        w4a[ids0 + l, ids0 + l] = 1.0
    b4a = np.zeros((1, slab_w), np.float32)
    b4a[0, 0:d_out] = np.asarray(b4, np.float32).reshape(-1)

    weights = (w1b, b1r, w2p, b2p, jnp.asarray(fsqc),
               jnp.asarray(w3a).astype(bf16), jnp.asarray(b3a),
               jnp.asarray(w4a).astype(bf16), jnp.asarray(b4a))
    meta = dict(d_in=d_in, H=H, Z=Z, z_layers=z_layers, d_out=d_out,
                q0=q0, ids0=ids0, slab_w=slab_w)
    return weights, meta


# ----------------------------------- forward --------------------------------------
def vqvae_forward(x, weights, meta, *, tile_b=None):
    w1b, b1r, w2p, b2p, fsqc, w3a, b3a, w4a, b4a = weights
    d_in, H, slab_w = meta["d_in"], meta["H"], meta["slab_w"]
    d_out, Z, z_layers = meta["d_out"], meta["Z"], meta["z_layers"]
    q0, ids0 = meta["q0"], meta["ids0"]

    B = x.shape[0]
    if tile_b is None:
        # Large tiles (fewer 0.35us grid steps, fuller MXU streaming dim) while
        # keeping >= 2 grid steps so both v7x TensorCores get work.
        tile_b = min(512, max(128, _round_up(pl.cdiv(B, 2), 128)))
    tb = tile_b
    b_pad = _round_up(B, tb)

    xb = x.astype(jnp.bfloat16)
    if b_pad != B:
        xb = jnp.pad(xb, ((0, b_pad - B), (0, 0)))

    resident = lambda shape: pl.BlockSpec(shape, lambda i: (0, 0))

    slab = pl.pallas_call(
        _vqvae_kernel,
        grid=(b_pad // tb,),
        in_specs=[
            pl.BlockSpec((tb, d_in), lambda i: (i, 0)),         # x: tiled over batch
            resident((d_in, H)), resident((1, H)),              # encoder layer 1
            resident((H, slab_w)), resident((1, slab_w)),       # encoder layer 2 (padded; shift folded)
            resident((3, slab_w)),                              # FSQ per-lane constants
            resident((slab_w, slab_w)), resident((1, slab_w)),  # fused decoder layer 1 + ids
            resident((slab_w, slab_w)), resident((1, slab_w)),  # fused decoder layer 2 + id pass-through
        ],
        out_specs=pl.BlockSpec((tb, slab_w), lambda i: (i, 0)),
        out_shape=jax.ShapeDtypeStruct((b_pad, slab_w), jnp.float32),
        compiler_params=pltpu.CompilerParams(
            dimension_semantics=("parallel",),   # batch axis -> megacore on v7x
        ),
    )(xb, w1b, b1r, w2p, b2p, fsqc, w3a, b3a, w4a, b4a)

    slab = slab[:B]
    dec = slab[:, :d_out]
    quant = slab[:, q0:q0 + Z]
    # values are exact small integers carried in f32 end-to-end
    id_t = jnp.round(slab[:, ids0:ids0 + z_layers]).astype(jnp.int32)
    diff = jnp.float32(0.0)              # FSQ branch: diff_t = tensor(0.0)
    return dec, diff, id_t, quant


# ------------------------- param init (matches torch Linear) -----------------------
def linear_init(key, fan_in, fan_out):
    bound = 1.0 / np.sqrt(fan_in)
    kw, kb = jax.random.split(key)
    w = jax.random.uniform(kw, (fan_in, fan_out), jnp.float32, -bound, bound)
    b = jax.random.uniform(kb, (1, fan_out), jnp.float32, -bound, bound)
    return w, b


# ----------------------------- reference (pure JAX) --------------------------------
def reference_forward(x, params, levels, z_layers):
    """Mirrors the kernel numerics: bf16 MXU operands, f32 accumulation, f32 FSQ."""
    w1, b1, w2, b2, w3, b3, w4, b4 = params
    z_dim = len(levels)
    shift, half_l, offset, half_w, basis = _fsq_constants_np(levels)
    inv_hw = (1.0 / half_w).astype(np.float32)
    bf16 = jnp.bfloat16
    dot = lambda a, b: jnp.dot(a.astype(bf16), b.astype(bf16),
                               preferred_element_type=jnp.float32)
    h1 = jnp.maximum(dot(x, w1) + b1.reshape(1, -1), 0.0)
    b2s = b2.reshape(1, -1) + jnp.asarray(np.tile(shift, z_layers))[None, :]
    z = dot(h1, w2) + b2s
    zr = z.reshape(-1, z_layers, z_dim)
    q = jnp.round(jnp.tanh(zr) * jnp.asarray(half_l) - jnp.asarray(offset))
    codes = q * jnp.asarray(inv_hw)
    ids = ((q + jnp.asarray(half_w)) * jnp.asarray(basis)).sum(-1).astype(jnp.int32)
    q_flat = q.reshape(x.shape[0], -1)
    w3s = w3 * jnp.asarray(np.tile(inv_hw, z_layers))[:, None]
    h2 = jnp.maximum(dot(q_flat, w3s) + b3.reshape(1, -1), 0.0)
    dec = dot(h2, w4) + b4.reshape(1, -1)
    return dec, ids, codes.reshape(x.shape[0], -1)


# ---------------------------------------- main --------------------------------------
if __name__ == "__main__":
    # FSQ(levels=[8,6,5]) without project_in/out requires z_dim == len(levels) == 3.
    levels = (8, 6, 5)
    z_dim = len(levels)           # 3
    z_layers = 8
    Z = z_layers * z_dim          # 24
    B, D_in, H, D_out = 256, 16, 32, 16

    key = jax.random.PRNGKey(0)
    k_x, k1, k2, k3, k4 = jax.random.split(key, 5)
    x = jax.random.normal(k_x, (B, D_in), jnp.float32)

    w1, b1 = linear_init(k1, D_in, H)
    w2, b2 = linear_init(k2, H, Z)
    w3, b3 = linear_init(k3, Z, H)
    w4, b4 = linear_init(k4, H, D_out)
    params = (w1, b1, w2, b2, w3, b3, w4, b4)

    # one-time weight padding / fusion, hoisted out of the forward path
    weights, meta = prepare_vqvae_params(params, levels=levels, z_layers=z_layers)

    fwd = jax.jit(lambda xx, ww: vqvae_forward(xx, ww, meta))
    dec, diff, id_t, quant = fwd(x, weights)
    jax.block_until_ready((dec, diff, id_t, quant))

    # sanity check against a pure-JAX reference with matching numerics
    dec_ref, ids_ref, quant_ref = reference_forward(x, params, levels, z_layers)
    np.testing.assert_allclose(np.asarray(quant), np.asarray(quant_ref),
                               rtol=1e-5, atol=1e-5)
    np.testing.assert_array_equal(np.asarray(id_t), np.asarray(ids_ref))
    np.testing.assert_allclose(np.asarray(dec), np.asarray(dec_ref),
                               rtol=2e-3, atol=2e-3)
    assert float(diff) == 0.0
    assert dec.shape == (B, D_out) and id_t.shape == (B, z_layers) and quant.shape == (B, Z)

    print("KERNEL_OK")
</pallas_src>

<mosaic_0001>
module attributes {stable_mosaic.version = 11 : i64} {
  func.func @_vqvae_kernel(%arg0: i32, %arg1: memref<128x16xbf16, #tpu.memory_space<vmem>>, %arg2: memref<16x32xbf16, #tpu.memory_space<vmem>>, %arg3: memref<1x32xf32, #tpu.memory_space<vmem>>, %arg4: memref<32x128xbf16, #tpu.memory_space<vmem>>, %arg5: memref<1x128xf32, #tpu.memory_space<vmem>>, %arg6: memref<3x128xf32, #tpu.memory_space<vmem>>, %arg7: memref<128x128xbf16, #tpu.memory_space<vmem>>, %arg8: memref<1x128xf32, #tpu.memory_space<vmem>>, %arg9: memref<128x128xbf16, #tpu.memory_space<vmem>>, %arg10: memref<1x128xf32, #tpu.memory_space<vmem>>, %arg11: memref<128x128xf32, #tpu.memory_space<vmem>>) attributes {dimension_semantics = [#tpu.dimension_semantics<parallel>], iteration_bounds = array<i64: 2>, scalar_prefetch = 0 : i64, scratch_operands = 0 : i64, tpu.core_type = #tpu.core_type<tc>, window_params = [{transform_indices = @transform_0, window_bounds = array<i64: 128, 16>}, {pipeline_mode = #tpu.pipeline_mode<synchronous>, transform_indices = @transform_1, window_bounds = array<i64: 16, 32>}, {pipeline_mode = #tpu.pipeline_mode<synchronous>, transform_indices = @transform_2, window_bounds = array<i64: 1, 32>}, {pipeline_mode = #tpu.pipeline_mode<synchronous>, transform_indices = @transform_3, window_bounds = array<i64: 32, 128>}, {pipeline_mode = #tpu.pipeline_mode<synchronous>, transform_indices = @transform_4, window_bounds = array<i64: 1, 128>}, {pipeline_mode = #tpu.pipeline_mode<synchronous>, transform_indices = @transform_5, window_bounds = array<i64: 3, 128>}, {pipeline_mode = #tpu.pipeline_mode<synchronous>, transform_indices = @transform_6, window_bounds = array<i64: 128, 128>}, {pipeline_mode = #tpu.pipeline_mode<synchronous>, transform_indices = @transform_7, window_bounds = array<i64: 1, 128>}, {pipeline_mode = #tpu.pipeline_mode<synchronous>, transform_indices = @transform_8, window_bounds = array<i64: 128, 128>}, {pipeline_mode = #tpu.pipeline_mode<synchronous>, transform_indices = @transform_9, window_bounds = array<i64: 1, 128>}, {transform_indices = @transform_10, window_bounds = array<i64: 128, 128>}]} {
    %c0 = arith.constant 0 : index
    %c0_0 = arith.constant 0 : index
    %0 = vector.load %arg1[%c0, %c0_0] : memref<128x16xbf16, #tpu.memory_space<vmem>>, vector<128x16xbf16>
    %c0_1 = arith.constant 0 : index
    %c0_2 = arith.constant 0 : index
    %1 = vector.load %arg2[%c0_1, %c0_2] : memref<16x32xbf16, #tpu.memory_space<vmem>>, vector<16x32xbf16>
    %cst = arith.constant dense<0.000000e+00> : vector<128x32xf32>
    %2 = tpu.matmul %0, %1, %cst {dimension_numbers = #tpu.dot_dimension_numbers<[1], [0], [0], [1], [0, 0, 1, 1], [], []>} : vector<128x16xbf16>, vector<16x32xbf16>, vector<128x32xf32> -> vector<128x32xf32>
    %c0_3 = arith.constant 0 : index
    %c0_4 = arith.constant 0 : index
    %3 = vector.load %arg3[%c0_3, %c0_4] : memref<1x32xf32, #tpu.memory_space<vmem>>, vector<1x32xf32>
    %4 = vector.broadcast %3 : vector<1x32xf32> to vector<128x32xf32>
    %5 = arith.addf %2, %4 : vector<128x32xf32>
    %cst_5 = arith.constant 0.000000e+00 : f32
    %6 = vector.broadcast %cst_5 : f32 to vector<128x32xf32>
    %7 = arith.maximumf %5, %6 : vector<128x32xf32>
    %8 = arith.truncf %7 : vector<128x32xf32> to vector<128x32xbf16>
    %c0_6 = arith.constant 0 : index
    %c0_7 = arith.constant 0 : index
    %9 = vector.load %arg4[%c0_6, %c0_7] : memref<32x128xbf16, #tpu.memory_space<vmem>>, vector<32x128xbf16>
    %cst_8 = arith.constant dense<0.000000e+00> : vector<128x128xf32>
    %10 = tpu.matmul %8, %9, %cst_8 {dimension_numbers = #tpu.dot_dimension_numbers<[1], [0], [0], [1], [0, 0, 1, 1], [], []>} : vector<128x32xbf16>, vector<32x128xbf16>, vector<128x128xf32> -> vector<128x128xf32>
    %c0_9 = arith.constant 0 : index
    %c0_10 = arith.constant 0 : index
    %11 = vector.load %arg5[%c0_9, %c0_10] : memref<1x128xf32, #tpu.memory_space<vmem>>, vector<1x128xf32>
    %12 = vector.broadcast %11 : vector<1x128xf32> to vector<128x128xf32>
    %13 = arith.addf %10, %12 : vector<128x128xf32>
    %c0_11 = arith.constant 0 : index
    %c0_12 = arith.constant 0 : index
    %14 = vector.load %arg6[%c0_11, %c0_12] : memref<3x128xf32, #tpu.memory_space<vmem>>, vector<3x128xf32>
    %15 = vector.extract_strided_slice %14 {offsets = [0, 0], sizes = [1, 128], strides = [1, 1]} : vector<3x128xf32> to vector<1x128xf32>
    %16 = vector.extract_strided_slice %14 {offsets = [1, 0], sizes = [1, 128], strides = [1, 1]} : vector<3x128xf32> to vector<1x128xf32>
    %17 = vector.extract_strided_slice %14 {offsets = [2, 0], sizes = [1, 128], strides = [1, 1]} : vector<3x128xf32> to vector<1x128xf32>
    %18 = math.tanh %13 : vector<128x128xf32>
    %19 = vector.broadcast %15 : vector<1x128xf32> to vector<128x128xf32>
    %20 = arith.mulf %18, %19 : vector<128x128xf32>
    %21 = vector.broadcast %16 : vector<1x128xf32> to vector<128x128xf32>
    %22 = arith.subf %20, %21 : vector<128x128xf32>
    %23 = math.roundeven %22 : vector<128x128xf32>
    %24 = vector.broadcast %17 : vector<1x128xf32> to vector<128x128xf32>
    %25 = arith.mulf %23, %24 : vector<128x128xf32>
    %26 = arith.truncf %23 : vector<128x128xf32> to vector<128x128xbf16>
    %c0_13 = arith.constant 0 : index
    %c0_14 = arith.constant 0 : index
    %27 = vector.load %arg7[%c0_13, %c0_14] : memref<128x128xbf16, #tpu.memory_space<vmem>>, vector<128x128xbf16>
    %cst_15 = arith.constant dense<0.000000e+00> : vector<128x128xf32>
    %28 = tpu.matmul %26, %27, %cst_15 {dimension_numbers = #tpu.dot_dimension_numbers<[1], [0], [0], [1], [0, 0, 1, 1], [], []>} : vector<128x128xbf16>, vector<128x128xbf16>, vector<128x128xf32> -> vector<128x128xf32>
    %c0_16 = arith.constant 0 : index
    %c0_17 = arith.constant 0 : index
    %29 = vector.load %arg8[%c0_16, %c0_17] : memref<1x128xf32, #tpu.memory_space<vmem>>, vector<1x128xf32>
    %30 = vector.broadcast %29 : vector<1x128xf32> to vector<128x128xf32>
    %31 = arith.addf %28, %30 : vector<128x128xf32>
    %cst_18 = arith.constant 0.000000e+00 : f32
    %32 = vector.broadcast %cst_18 : f32 to vector<128x128xf32>
    %33 = arith.maximumf %31, %32 : vector<128x128xf32>
    %34 = arith.truncf %33 : vector<128x128xf32> to vector<128x128xbf16>
    %c0_19 = arith.constant 0 : index
    %c0_20 = arith.constant 0 : index
    %35 = vector.load %arg9[%c0_19, %c0_20] : memref<128x128xbf16, #tpu.memory_space<vmem>>, vector<128x128xbf16>
    %cst_21 = arith.constant dense<0.000000e+00> : vector<128x128xf32>
    %36 = tpu.matmul %34, %35, %cst_21 {dimension_numbers = #tpu.dot_dimension_numbers<[1], [0], [0], [1], [0, 0, 1, 1], [], []>} : vector<128x128xbf16>, vector<128x128xbf16>, vector<128x128xf32> -> vector<128x128xf32>
    %c0_22 = arith.constant 0 : index
    %c0_23 = arith.constant 0 : index
    %37 = vector.load %arg10[%c0_22, %c0_23] : memref<1x128xf32, #tpu.memory_space<vmem>>, vector<1x128xf32>
    %38 = vector.broadcast %37 : vector<1x128xf32> to vector<128x128xf32>
    %39 = arith.addf %36, %38 : vector<128x128xf32>
    %40 = arith.addf %39, %25 : vector<128x128xf32>
    %c0_24 = arith.constant 0 : index
    %c0_25 = arith.constant 0 : index
    %41 = vector.load %arg11[%c0_24, %c0_25] : memref<128x128xf32, #tpu.memory_space<vmem>>, vector<128x128xf32>
    tpu.vector_store %arg11[%c0_24, %c0_25], %40 {strides = array<i32>} : memref<128x128xf32, #tpu.memory_space<vmem>>, vector<128x128xf32>,
    return
  }
  func.func @transform_0(%arg0: i32) -> (i32, i32) {
    %c0_i32 = arith.constant 0 : i32
    %c0_i32_0 = arith.constant 0 : i32
    return %arg0, %c0_i32 : i32, i32
  }
  func.func @transform_1(%arg0: i32) -> (i32, i32) {
    %c0_i32 = arith.constant 0 : i32
    %c0_i32_0 = arith.constant 0 : i32
    %c0_i32_1 = arith.constant 0 : i32
    return %c0_i32, %c0_i32_0 : i32, i32
  }
  func.func @transform_2(%arg0: i32) -> (i32, i32) {
    %c0_i32 = arith.constant 0 : i32
    %c0_i32_0 = arith.constant 0 : i32
    %c0_i32_1 = arith.constant 0 : i32
    return %c0_i32, %c0_i32_0 : i32, i32
  }
  func.func @transform_3(%arg0: i32) -> (i32, i32) {
    %c0_i32 = arith.constant 0 : i32
    %c0_i32_0 = arith.constant 0 : i32
    %c0_i32_1 = arith.constant 0 : i32
    return %c0_i32, %c0_i32_0 : i32, i32
  }
  func.func @transform_4(%arg0: i32) -> (i32, i32) {
    %c0_i32 = arith.constant 0 : i32
    %c0_i32_0 = arith.constant 0 : i32
    %c0_i32_1 = arith.constant 0 : i32
    return %c0_i32, %c0_i32_0 : i32, i32
  }
  func.func @transform_5(%arg0: i32) -> (i32, i32) {
    %c0_i32 = arith.constant 0 : i32
    %c0_i32_0 = arith.constant 0 : i32
    %c0_i32_1 = arith.constant 0 : i32
    return %c0_i32, %c0_i32_0 : i32, i32
  }
  func.func @transform_6(%arg0: i32) -> (i32, i32) {
    %c0_i32 = arith.constant 0 : i32
    %c0_i32_0 = arith.constant 0 : i32
    %c0_i32_1 = arith.constant 0 : i32
    return %c0_i32, %c0_i32_0 : i32, i32
  }
  func.func @transform_7(%arg0: i32) -> (i32, i32) {
    %c0_i32 = arith.constant 0 : i32
    %c0_i32_0 = arith.constant 0 : i32
    %c0_i32_1 = arith.constant 0 : i32
    return %c0_i32, %c0_i32_0 : i32, i32
  }
  func.func @transform_8(%arg0: i32) -> (i32, i32) {
    %c0_i32 = arith.constant 0 : i32
    %c0_i32_0 = arith.constant 0 : i32
    %c0_i32_1 = arith.constant 0 : i32
    return %c0_i32, %c0_i32_0 : i32, i32
  }
  func.func @transform_9(%arg0: i32) -> (i32, i32) {
    %c0_i32 = arith.constant 0 : i32
    %c0_i32_0 = arith.constant 0 : i32
    %c0_i32_1 = arith.constant 0 : i32
    return %c0_i32, %c0_i32_0 : i32, i32
  }
  func.func @transform_10(%arg0: i32) -> (i32, i32) {
    %c0_i32 = arith.constant 0 : i32
    %c0_i32_0 = arith.constant 0 : i32
    return %arg0, %c0_i32 : i32, i32
  }
}

</mosaic_0001>

<llo_original>
// kernel: _lambda_.1
$region0: #{_lambda_.1}
  #allocation0 [shape = 'u32[]', space=smem, size = 0x4, offset = 0x4, fixed_abs, tag = 'smem constant byte address 0x4 - core index']
  #allocation1 [shape = 'u32[72,128]{1,0:T(1,128)}', space=vmem, size = 0x9000, scoped, tag = 'internal scratch']
  %s0 = inlined_call_operand.vmem [shape: bf16[256,16], index: 0, kind: input, shape index: {}]
  %s1 = inlined_call_operand.vmem [shape: bf16[16,32], index: 1, kind: input, shape index: {}]
  %s2 = inlined_call_operand.vmem [shape: f32[1,32], index: 2, kind: input, shape index: {}]
  %s3 = inlined_call_operand.vmem [shape: bf16[32,128], index: 3, kind: input, shape index: {}]
  %s4 = inlined_call_operand.vmem [shape: f32[1,128], index: 4, kind: input, shape index: {}]
  %s5 = inlined_call_operand.vmem [shape: f32[3,128], index: 5, kind: input, shape index: {}]
  %s6 = inlined_call_operand.vmem [shape: bf16[128,128], index: 6, kind: input, shape index: {}]
  %s7 = inlined_call_operand.vmem [shape: f32[1,128], index: 7, kind: input, shape index: {}]
  %s8 = inlined_call_operand.vmem [shape: bf16[128,128], index: 8, kind: input, shape index: {}]
  %s9 = inlined_call_operand.vmem [shape: f32[1,128], index: 9, kind: input, shape index: {}]
  %s10 = inlined_call_operand.vmem [shape: f32[256,128], index: 10, kind: output, shape index: {}]
  %s11 = sld [smem:[#allocation0]]
  $region73: #{_lambda_.1} parent=0
    _
  %s13 = ssub.s32 1, %s11
  %s14 = scalar_select 0, %s13, %s11
  loop: start=0, step=1, limit=4
  $region2: #{_lambda_.1} parent=0 // loop_pre_header
    _
  $region3: #{_lambda_.1} parent=0 // loop_header
    %s16 = sphi 0, %s20
    %p17 = scmp.ge.s32.totalorder %s16, 4
    %s26 = sphi 0, %s28
    %s29 = sphi 0, %s26
    %s30 = sphi 0, %s29
    %s46 = sphi 0, %s30
    %s50 = sphi 0, %s50
    %s52 = sphi 0, %s50
    %s53 = sphi 0, %s52
    %s67 = sphi 0, %s53
    %s71 = sphi 0, %s71
    %s73 = sphi 0, %s71
    %s74 = sphi 0, %s73
    %s88 = sphi 0, %s74
    %s92 = sphi 0, %s92
    %s94 = sphi 0, %s92
    %s95 = sphi 0, %s94
    %s109 = sphi 0, %s95
    %s113 = sphi 0, %s113
    %s115 = sphi 0, %s113
    %s116 = sphi 0, %s115
    %s130 = sphi 0, %s116
    %s134 = sphi 0, %s134
    %s136 = sphi 0, %s134
    %s137 = sphi 0, %s136
    %s151 = sphi 0, %s137
    %s155 = sphi 0, %s155
    %s157 = sphi 0, %s155
    %s158 = sphi 0, %s157
    %s172 = sphi 0, %s158
    %s176 = sphi 0, %s176
    %s178 = sphi 0, %s176
    %s179 = sphi 0, %s178
    %s193 = sphi 0, %s179
    %s197 = sphi 0, %s197
    %s199 = sphi 0, %s197
    %s200 = sphi 0, %s199
    %s214 = sphi 0, %s200
    %s218 = sphi 0, %s218
    %s220 = sphi 0, %s218
    %s221 = sphi 0, %s220
    %s235 = sphi 0, %s221
    %s241 = sphi 0, %s243
    %s244 = sphi 0, %s241
    %s245 = sphi 0, %s244
    %s261 = sphi 0, %s245
  $region4: #{_lambda_.1} parent=0 // loop_header_branch
    %19 = sbr.rel (%p17) target = $region8
  $region5: #{_lambda_.1} parent=0 // loop_body
    %s21 = ssub.s32 %s16, 1
    %s22 = ssub.s32 %s16, 2
    %s23 = sadd.s32 %s16, 1
    %s24 = ssub.s32 %s16, %s23
    %p25 = scmp.eq.s32.totalorder %s24, 0
    %s27 = sadd.s32 %s26, 1
    %s28 = scalar_select %p25, %s26, %s27
    %p31 = pneg %p25
    %p32 = scmp.eq.s32.totalorder %s16, 1
    %p33 = por %p31, %p32
    %p34 = scmp.ne.s32.totalorder %s26, %s29
    %p35 = scmp.eq.s32.totalorder %s16, 0
    %p36 = por %p34, %p35
    %p37 = scmp.ne.s32.totalorder %s26, %s29
    %p38 = scmp.eq.s32.totalorder %s21, 1
    %p39 = por %p37, %p38
    %p40 = scmp.ne.s32.totalorder %s29, %s30
    %p41 = scmp.eq.s32.totalorder %s21, 0
    %p42 = por %p40, %p41
    %p43 = scmp.ne.s32.totalorder %s29, %s30
    %p44 = scmp.eq.s32.totalorder %s22, 1
    %p45 = por %p43, %p44
    %p47 = scmp.ne.s32.totalorder %s30, %s46
    %p48 = scmp.eq.s32.totalorder %s22, 0
    %p49 = por %p47, %p48
    %s51 = sadd.s32 %s50, 1
    %p54 = scmp.eq.s32.totalorder %s16, 1
    %p55 = scmp.ne.s32.totalorder %s50, %s52
    %p56 = scmp.eq.s32.totalorder %s16, 0
    %p57 = por %p55, %p56
    %p58 = scmp.ne.s32.totalorder %s50, %s52
    %p59 = scmp.eq.s32.totalorder %s21, 1
    %p60 = por %p58, %p59
    %p61 = scmp.ne.s32.totalorder %s52, %s53
    %p62 = scmp.eq.s32.totalorder %s21, 0
    %p63 = por %p61, %p62
    %p64 = scmp.ne.s32.totalorder %s52, %s53
    %p65 = scmp.eq.s32.totalorder %s22, 1
    %p66 = por %p64, %p65
    %p68 = scmp.ne.s32.totalorder %s53, %s67
    %p69 = scmp.eq.s32.totalorder %s22, 0
    %p70 = por %p68, %p69
    %s72 = sadd.s32 %s71, 1
    %p75 = scmp.eq.s32.totalorder %s16, 1
    %p76 = scmp.ne.s32.totalorder %s71, %s73
    %p77 = scmp.eq.s32.totalorder %s16, 0
    %p78 = por %p76, %p77
    %p79 = scmp.ne.s32.totalorder %s71, %s73
    %p80 = scmp.eq.s32.totalorder %s21, 1
    %p81 = por %p79, %p80
    %p82 = scmp.ne.s32.totalorder %s73, %s74
    %p83 = scmp.eq.s32.totalorder %s21, 0
    %p84 = por %p82, %p83
    %p85 = scmp.ne.s32.totalorder %s73, %s74
    %p86 = scmp.eq.s32.totalorder %s22, 1
    %p87 = por %p85, %p86
    %p89 = scmp.ne.s32.totalorder %s74, %s88
    %p90 = scmp.eq.s32.totalorder %s22, 0
    %p91 = por %p89, %p90
    %s93 = sadd.s32 %s92, 1
    %p96 = scmp.eq.s32.totalorder %s16, 1
    %p97 = scmp.ne.s32.totalorder %s92, %s94
    %p98 = scmp.eq.s32.totalorder %s16, 0
    %p99 = por %p97, %p98
    %p100 = scmp.ne.s32.totalorder %s92, %s94
    %p101 = scmp.eq.s32.totalorder %s21, 1
    %p102 = por %p100, %p101
    %p103 = scmp.ne.s32.totalorder %s94, %s95
    %p104 = scmp.eq.s32.totalorder %s21, 0
    %p105 = por %p103, %p104
    %p106 = scmp.ne.s32.totalorder %s94, %s95
    %p107 = scmp.eq.s32.totalorder %s22, 1
    %p108 = por %p106, %p107
    %p110 = scmp.ne.s32.totalorder %s95, %s109
    %p111 = scmp.eq.s32.totalorder %s22, 0
    %p112 = por %p110, %p111
    %s114 = sadd.s32 %s113, 1
    %p117 = scmp.eq.s32.totalorder %s16, 1
    %p118 = scmp.ne.s32.totalorder %s113, %s115
    %p119 = scmp.eq.s32.totalorder %s16, 0
    %p120 = por %p118, %p119
    %p121 = scmp.ne.s32.totalorder %s113, %s115
    %p122 = scmp.eq.s32.totalorder %s21, 1
    %p123 = por %p121, %p122
    %p124 = scmp.ne.s32.totalorder %s115, %s116
    %p125 = scmp.eq.s32.totalorder %s21, 0
    %p126 = por %p124, %p125
    %p127 = scmp.ne.s32.totalorder %s115, %s116
    %p128 = scmp.eq.s32.totalorder %s22, 1
    %p129 = por %p127, %p128
    %p131 = scmp.ne.s32.totalorder %s116, %s130
    %p132 = scmp.eq.s32.totalorder %s22, 0
    %p133 = por %p131, %p132
    %s135 = sadd.s32 %s134, 1
    %p138 = scmp.eq.s32.totalorder %s16, 1
    %p139 = scmp.ne.s32.totalorder %s134, %s136
    %p140 = scmp.eq.s32.totalorder %s16, 0
    %p141 = por %p139, %p140
    %p142 = scmp.ne.s32.totalorder %s134, %s136
    %p143 = scmp.eq.s32.totalorder %s21, 1
    %p144 = por %p142, %p143
    %p145 = scmp.ne.s32.totalorder %s136, %s137
    %p146 = scmp.eq.s32.totalorder %s21, 0
    %p147 = por %p145, %p146
    %p148 = scmp.ne.s32.totalorder %s136, %s137
    %p149 = scmp.eq.s32.totalorder %s22, 1
    %p150 = por %p148, %p149
    %p152 = scmp.ne.s32.totalorder %s137, %s151
    %p153 = scmp.eq.s32.totalorder %s22, 0
    %p154 = por %p152, %p153
    %s156 = sadd.s32 %s155, 1
    %p159 = scmp.eq.s32.totalorder %s16, 1
    %p160 = scmp.ne.s32.totalorder %s155, %s157
    %p161 = scmp.eq.s32.totalorder %s16, 0
    %p162 = por %p160, %p161
    %p163 = scmp.ne.s32.totalorder %s155, %s157
    %p164 = scmp.eq.s32.totalorder %s21, 1
    %p165 = por %p163, %p164
    %p166 = scmp.ne.s32.totalorder %s157, %s158
    %p167 = scmp.eq.s32.totalorder %s21, 0
    %p168 = por %p166, %p167
    %p169 = scmp.ne.s32.totalorder %s157, %s158
    %p170 = scmp.eq.s32.totalorder %s22, 1
    %p171 = por %p169, %p170
    %p173 = scmp.ne.s32.totalorder %s158, %s172
    %p174 = scmp.eq.s32.totalorder %s22, 0
    %p175 = por %p173, %p174
    %s177 = sadd.s32 %s176, 1
    %p180 = scmp.eq.s32.totalorder %s16, 1
    %p181 = scmp.ne.s32.totalorder %s176, %s178
    %p182 = scmp.eq.s32.totalorder %s16, 0
    %p183 = por %p181, %p182
    %p184 = scmp.ne.s32.totalorder %s176, %s178
    %p185 = scmp.eq.s32.totalorder %s21, 1
    %p186 = por %p184, %p185
    %p187 = scmp.ne.s32.totalorder %s178, %s179
    %p188 = scmp.eq.s32.totalorder %s21, 0
    %p189 = por %p187, %p188
    %p190 = scmp.ne.s32.totalorder %s178, %s179
    %p191 = scmp.eq.s32.totalorder %s22, 1
    %p192 = por %p190, %p191
    %p194 = scmp.ne.s32.totalorder %s179, %s193
    %p195 = scmp.eq.s32.totalorder %s22, 0
    %p196 = por %p194, %p195
    %s198 = sadd.s32 %s197, 1
    %p201 = scmp.eq.s32.totalorder %s16, 1
    %p202 = scmp.ne.s32.totalorder %s197, %s199
    %p203 = scmp.eq.s32.totalorder %s16, 0
    %p204 = por %p202, %p203
    %p205 = scmp.ne.s32.totalorder %s197, %s199
    %p206 = scmp.eq.s32.totalorder %s21, 1
    %p207 = por %p205, %p206
    %p208 = scmp.ne.s32.totalorder %s199, %s200
    %p209 = scmp.eq.s32.totalorder %s21, 0
    %p210 = por %p208, %p209
    %p211 = scmp.ne.s32.totalorder %s199, %s200
    %p212 = scmp.eq.s32.totalorder %s22, 1
    %p213 = por %p211, %p212
    %p215 = scmp.ne.s32.totalorder %s200, %s214
    %p216 = scmp.eq.s32.totalorder %s22, 0
    %p217 = por %p215, %p216
    %s219 = sadd.s32 %s218, 1
    %p222 = scmp.eq.s32.totalorder %s16, 1
    %p223 = scmp.ne.s32.totalorder %s218, %s220
    %p224 = scmp.eq.s32.totalorder %s16, 0
    %p225 = por %p223, %p224
    %p226 = scmp.ne.s32.totalorder %s218, %s220
    %p227 = scmp.eq.s32.totalorder %s21, 1
    %p228 = por %p226, %p227
    %p229 = scmp.ne.s32.totalorder %s220, %s221
    %p230 = scmp.eq.s32.totalorder %s21, 0
    %p231 = por %p229, %p230
    %p232 = scmp.ne.s32.totalorder %s220, %s221
    %p233 = scmp.eq.s32.totalorder %s22, 1
    %p234 = por %p232, %p233
    %p236 = scmp.ne.s32.totalorder %s221, %s235
    %p237 = scmp.eq.s32.totalorder %s22, 0
    %p238 = por %p236, %p237
    %s239 = ssub.s32 %s16, %s23
    %p240 = scmp.eq.s32.totalorder %s239, 0
    %s242 = sadd.s32 %s241, 1
    %s243 = scalar_select %p240, %s241, %s242
    %p246 = pneg %p240
    %p247 = scmp.eq.s32.totalorder %s16, 1
    %p248 = por %p246, %p247
    %p249 = scmp.ne.s32.totalorder %s241, %s244
    %p250 = scmp.eq.s32.totalorder %s16, 0
    %p251 = por %p249, %p250
    %p252 = scmp.ne.s32.totalorder %s241, %s244
    %p253 = scmp.eq.s32.totalorder %s21, 1
    %p254 = por %p252, %p253
    %p255 = scmp.ne.s32.totalorder %s244, %s245
    %p256 = scmp.eq.s32.totalorder %s21, 0
    %p257 = por %p255, %p256
    %p258 = scmp.ne.s32.totalorder %s244, %s245
    %p259 = scmp.eq.s32.totalorder %s22, 1
    %p260 = por %p258, %p259
    %p262 = scmp.ne.s32.totalorder %s245, %s261
    %p263 = scmp.eq.s32.totalorder %s22, 0
    %p264 = por %p262, %p263
    %p265 = scmp.le.s32.totalorder 1, %s16
    %p266 = scmp.lt.s32.totalorder %s16, 3
    %p267 = pnand %p265, %p266
    %p268 = pneg %p267
    // Predicated region
    $region9: #{_lambda_.1} parent=5 // pred_check
      _
    $region10: #{_lambda_.1} parent=5 // pred_check_branch
      %270 = sbr.rel (%p267) target = $region12
    $region11: #{_lambda_.1} parent=5 // pred_region
      %s271 = ssub.s32 %s16, 1
      // Predicated region
      $region13: #{_lambda_.1} parent=11 // pred_check
        %p272 = pneg %p63
      $region14: #{_lambda_.1} parent=11 // pred_check_branch
        %274 = sbr.rel (%p272) target = $region16
      $region15: #{_lambda_.1} parent=11 // pred_region
        _
      $region16: #{_lambda_.1} parent=11 // pred_fallthru
        _
      // Predicated region
      $region17: #{_lambda_.1} parent=11 // pred_check
        %p275 = pneg %p84
      $region18: #{_lambda_.1} parent=11 // pred_check_branch
        %277 = sbr.rel (%p275) target = $region20
      $region19: #{_lambda_.1} parent=11 // pred_region
        _
      $region20: #{_lambda_.1} parent=11 // pred_fallthru
        _
      // Predicated region
      $region21: #{_lambda_.1} parent=11 // pred_check
        %p278 = pneg %p105
      $region22: #{_lambda_.1} parent=11 // pred_check_branch
        %280 = sbr.rel (%p278) target = $region24
      $region23: #{_lambda_.1} parent=11 // pred_region
        _
      $region24: #{_lambda_.1} parent=11 // pred_fallthru
        _
      // Predicated region
      $region25: #{_lambda_.1} parent=11 // pred_check
        %p281 = pneg %p126
      $region26: #{_lambda_.1} parent=11 // pred_check_branch
        %283 = sbr.rel (%p281) target = $region28
      $region27: #{_lambda_.1} parent=11 // pred_region
        _
      $region28: #{_lambda_.1} parent=11 // pred_fallthru
        _
      // Predicated region
      $region29: #{_lambda_.1} parent=11 // pred_check
        %p284 = pneg %p147
      $region30: #{_lambda_.1} parent=11 // pred_check_branch
        %286 = sbr.rel (%p284) target = $region32
      $region31: #{_lambda_.1} parent=11 // pred_region
        _
      $region32: #{_lambda_.1} parent=11 // pred_fallthru
        _
      // Predicated region
      $region33: #{_lambda_.1} parent=11 // pred_check
        %p287 = pneg %p168
      $region34: #{_lambda_.1} parent=11 // pred_check_branch
        %289 = sbr.rel (%p287) target = $region36
      $region35: #{_lambda_.1} parent=11 // pred_region
        _
      $region36: #{_lambda_.1} parent=11 // pred_fallthru
        _
      // Predicated region
      $region37: #{_lambda_.1} parent=11 // pred_check
        %p290 = pneg %p189
      $region38: #{_lambda_.1} parent=11 // pred_check_branch
        %292 = sbr.rel (%p290) target = $region40
      $region39: #{_lambda_.1} parent=11 // pred_region
        _
      $region40: #{_lambda_.1} parent=11 // pred_fallthru
        _
      // Predicated region
      $region41: #{_lambda_.1} parent=11 // pred_check
        %p293 = pneg %p210
      $region42: #{_lambda_.1} parent=11 // pred_check_branch
        %295 = sbr.rel (%p293) target = $region44
      $region43: #{_lambda_.1} parent=11 // pred_region
        _
      $region44: #{_lambda_.1} parent=11 // pred_fallthru
        _
      // Predicated region
      $region45: #{_lambda_.1} parent=11 // pred_check
        %p296 = pneg %p231
      $region46: #{_lambda_.1} parent=11 // pred_check_branch
        %298 = sbr.rel (%p296) target = $region48
      $region47: #{_lambda_.1} parent=11 // pred_region
        _
      $region48: #{_lambda_.1} parent=11 // pred_fallthru
        _
    $region12: #{_lambda_.1} parent=5 // pred_fallthru
      _
    %p299 = scmp.lt.s32.totalorder %s16, 2
    // Predicated region
    $region49: #{_lambda_.1} parent=5 // pred_check
      %p300 = pneg %p299
    $region50: #{_lambda_.1} parent=5 // pred_check_branch
      %302 = sbr.rel (%p300) target = $region52
    $region51: #{_lambda_.1} parent=5 // pred_region
      // Predicated region
      $region53: #{_lambda_.1} parent=51 // pred_check
        %p303 = pneg %p36
      $region54: #{_lambda_.1} parent=51 // pred_check_branch
        %305 = sbr.rel (%p303) target = $region56
      $region55: #{_lambda_.1} parent=51 // pred_region
        %s306 = smul.u32 16, %s16
        %p307 = scmp.lt.s32.totalorder %s306, 31
        %s308 = scalar_select %p307, %s306, 31
        %s309 = smul.addr %s308, 4
        %s310 = scalar_lea.vmem %s0, %s309
        %s311 = smul.u32 16, %s16
      $region56: #{_lambda_.1} parent=51 // pred_fallthru
        _
    $region52: #{_lambda_.1} parent=5 // pred_fallthru
      _
    %p312 = scmp.le.s32.totalorder 1, %s16
    %p313 = scmp.lt.s32.totalorder %s16, 3
    %p314 = pnand %p312, %p313
    %p315 = pneg %p314
    // Predicated region
    $region57: #{_lambda_.1} parent=5 // pred_check
      _
    $region58: #{_lambda_.1} parent=5 // pred_check_branch
      %317 = sbr.rel (%p314) target = $region60
    $region59: #{_lambda_.1} parent=5 // pred_region
      %s318 = ssub.s32 %s16, 1
      %s319 = smul.u32 16, %s21
      %p320 = scmp.lt.s32.totalorder %s319, 31
      %s321 = scalar_select %p320, %s319, 31
      %s322 = smul.addr %s321, 4
      %s323 = scalar_lea.vmem %s0, %s322
      %p324 = pneg %p42
      %p325 = pneg %p39
      %p326 = pneg %p63
      %p327 = pneg %p60
      %p328 = pneg %p84
      %p329 = pneg %p81
      %p330 = pneg %p105
      %p331 = pneg %p102
      %p332 = pneg %p126
      %p333 = pneg %p123
      %p334 = pneg %p147
      %p335 = pneg %p144
      %p336 = pneg %p168
      %p337 = pneg %p165
      %p338 = pneg %p189
      %p339 = pneg %p186
      %p340 = pneg %p210
      %p341 = pneg %p207
      %p342 = pneg %p231
      %p343 = pneg %p228
      %p344 = pneg %p257
      %p345 = pneg %p254
      %s346 = smul.u32 16, %s21
      %p347 = scmp.lt.s32.totalorder %s346, 31
      %s348 = scalar_select %p347, %s346, 31
      %s349 = smul.addr %s348, 8
      %s350 = scalar_lea.vmem %s10, %s349
      %s351 = smul.u32 16, %s21
      %p352 = scmp.lt.s32.totalorder %s351, 31
      %s353 = scalar_select %p352, %s351, 31
      %s354 = smul.addr %s353, 4
      %s355 = scalar_lea.vmem %s0, %s354
      %s356 = smul.u32 16, %s21
      %s357 = smul.u32 16, %s21
      %p358 = scmp.lt.s32.totalorder %s357, 31
      %s359 = scalar_select %p358, %s357, 31
      %s360 = smul.addr %s359, 8
      %s361 = scalar_lea.vmem %s10, %s360
      %s362 = smul.u32 16, %s21
      %v364 = vld [vmem:[%s355] sm:$0xf]
      %v365 = vld [vmem:[%s355 + $0x4] sm:$0xf]
      %v366 = vld [vmem:[%s355 + $0x8] sm:$0xf]
      %v367 = vld [vmem:[%s355 + $0xc] sm:$0xf]
      %v368 = vld [vmem:[%s355 + $0x10] sm:$0xf]
      %v369 = vld [vmem:[%s355 + $0x14] sm:$0xf]
      %v370 = vld [vmem:[%s355 + $0x18] sm:$0xf]
      %v371 = vld [vmem:[%s355 + $0x1c] sm:$0xf]
      %v372 = vld [vmem:[%s355 + $0x20] sm:$0xf]
      %v373 = vld [vmem:[%s355 + $0x24] sm:$0xf]
      %v374 = vld [vmem:[%s355 + $0x28] sm:$0xf]
      %v375 = vld [vmem:[%s355 + $0x2c] sm:$0xf]
      %v376 = vld [vmem:[%s355 + $0x30] sm:$0xf]
      %v377 = vld [vmem:[%s355 + $0x34] sm:$0xf]
      %v378 = vld [vmem:[%s355 + $0x38] sm:$0xf]
      %v379 = vld [vmem:[%s355 + $0x3c] sm:$0xf]
      %v380 = vld [vmem:[%s1] sm:$0xf]
      %v381 = vld [vmem:[%s1 + $0x4] sm:$0xf]
      %v382 = vld [vmem:[%s2] sm:$0x1]
      %v384 = vperm.slane %v382, 0
      %v402 = vunpack.c.l.b16 %v364
      %v403 = vunpack.c.l.b16 %v365
      %v404 = vunpack.c.l.b16 %v366
      %v405 = vunpack.c.l.b16 %v367
      %v406 = vunpack.c.l.b16 %v368
      %v407 = vunpack.c.l.b16 %v369
      %v408 = vunpack.c.l.b16 %v370
      %v409 = vunpack.c.l.b16 %v371
      %v410 = vunpack.c.l.b16 %v372
      %v411 = vunpack.c.l.b16 %v373
      %v412 = vunpack.c.l.b16 %v374
      %v413 = vunpack.c.l.b16 %v375
      %v414 = vunpack.c.l.b16 %v376
      %v415 = vunpack.c.l.b16 %v377
      %v416 = vunpack.c.l.b16 %v378
      %v417 = vunpack.c.l.b16 %v379
      %v418 = vpack.c.b16 %v403, %v402
      %v419 = vpack.c.b16 %v405, %v404
      %v420 = vpack.c.b16 %v407, %v406
      %v421 = vpack.c.b16 %v409, %v408
      %v422 = vpack.c.b16 %v411, %v410
      %v423 = vpack.c.b16 %v413, %v412
      %v424 = vpack.c.b16 %v415, %v414
      %v425 = vpack.c.b16 %v417, %v416
      %v428 = vunpack.c.l.b16 %v380
      %v429 = vunpack.c.l.b16 %v381
      %v430 = vpack.c.b16 %v429, %v428
      %vm432 = vcmask 130048
      %v434 = vsel %vm432, %v418, 0
      %v437 = vsel %vm432, %v419, 0
      %v440 = vsel %vm432, %v420, 0
      %v443 = vsel %vm432, %v421, 0
      %v446 = vsel %vm432, %v422, 0
      %v449 = vsel %vm432, %v423, 0
      %v452 = vsel %vm432, %v424, 0
      %v455 = vsel %vm432, %v425, 0
      %457 = vmatpush.bf16.msra.mxu0 0
      %458 = vmatpush.bf16.msra.mxu0 0
      %459 = vmatpush.bf16.msra.mxu0 0
      %460 = vmatpush.bf16.msra.mxu0 0
      %461 = vmatpush.bf16.msra.mxu0 0
      %462 = vmatpush.bf16.msra.mxu0 0
      %463 = vmatpush.bf16.msra.mxu0 0
      %464 = vmatpush.bf16.msra.mxu0 %v430
      %465 = vmatmul.bf16.gmra.mxu0 %v434
      %v466 = vpop.f32.mrf.mxu0
      %v467 = vadd.f32 %v384, %v466
      %v468 = vpop.f32.mrf.mxu0
      %v469 = vadd.f32 %v384, %v468
      %470 = vmatmul.bf16.gmra.mxu0 %v437
      %v471 = vpop.f32.mrf.mxu0
      %v472 = vadd.f32 %v384, %v471
      %v473 = vpop.f32.mrf.mxu0
      %v474 = vadd.f32 %v384, %v473
      %475 = vmatmul.bf16.gmra.mxu0 %v440
      %v476 = vpop.f32.mrf.mxu0
      %v477 = vadd.f32 %v384, %v476
      %v478 = vpop.f32.mrf.mxu0
      %v479 = vadd.f32 %v384, %v478
      %480 = vmatmul.bf16.gmra.mxu0 %v443
      %v481 = vpop.f32.mrf.mxu0
      %v482 = vadd.f32 %v384, %v481
      %v483 = vpop.f32.mrf.mxu0
      %v484 = vadd.f32 %v384, %v483
      %485 = vmatmul.bf16.gmra.mxu0 %v446
      %v486 = vpop.f32.mrf.mxu0
      %v487 = vadd.f32 %v384, %v486
      %v488 = vpop.f32.mrf.mxu0
      %v489 = vadd.f32 %v384, %v488
      %490 = vmatmul.bf16.gmra.mxu0 %v449
      %v491 = vpop.f32.mrf.mxu0
      %v492 = vadd.f32 %v384, %v491
      %v493 = vpop.f32.mrf.mxu0
      %v494 = vadd.f32 %v384, %v493
      %495 = vmatmul.bf16.gmra.mxu0 %v452
      %v496 = vpop.f32.mrf.mxu0
      %v497 = vadd.f32 %v384, %v496
      %v498 = vpop.f32.mrf.mxu0
      %v499 = vadd.f32 %v384, %v498
      %500 = vmatmul.bf16.gmra.mxu0 %v455
      %v501 = vpop.f32.mrf.mxu0
      %v502 = vadd.f32 %v384, %v501
      %v503 = vpop.f32.mrf.mxu0
      %v504 = vadd.f32 %v384, %v503
      %505 = vdwg.mxu0
      %v506 = vmax.f32 %v467, 0.0
      %v507 = vmax.f32 %v469, 0.0
      %v508 = vmax.f32 %v472, 0.0
      %v509 = vmax.f32 %v474, 0.0
      %v510 = vmax.f32 %v477, 0.0
      %v511 = vmax.f32 %v479, 0.0
      %v512 = vmax.f32 %v482, 0.0
      %v513 = vmax.f32 %v484, 0.0
      %v514 = vmax.f32 %v487, 0.0
      %v515 = vmax.f32 %v489, 0.0
      %v516 = vmax.f32 %v492, 0.0
      %v517 = vmax.f32 %v494, 0.0
      %v518 = vmax.f32 %v497, 0.0
      %v519 = vmax.f32 %v499, 0.0
      %v520 = vmax.f32 %v502, 0.0
      %v521 = vmax.f32 %v504, 0.0
      %v522 = vpack.c.bf16 %v507, %v506
      %v523 = vpack.c.bf16 %v509, %v508
      %v524 = vpack.c.bf16 %v511, %v510
      %v525 = vpack.c.bf16 %v513, %v512
      %v526 = vpack.c.bf16 %v515, %v514
      %v527 = vpack.c.bf16 %v517, %v516
      %v528 = vpack.c.bf16 %v519, %v518
      %v529 = vpack.c.bf16 %v521, %v520
      %v530 = vld [vmem:[%s3] sm:$0xf]
      %v531 = vld [vmem:[%s3 + $0x4] sm:$0xf]
      %v532 = vld [vmem:[%s3 + $0x8] sm:$0xf]
      %v533 = vld [vmem:[%s3 + $0xc] sm:$0xf]
      %v534 = vld [vmem:[%s4] sm:$0x1]
      %v536 = vperm.slane %v534, 0
      %v542 = vunpack.c.l.b16 %v530
      %v543 = vunpack.c.l.b16 %v531
      %v544 = vunpack.c.l.b16 %v532
      %v545 = vunpack.c.l.b16 %v533
      %v546 = vpack.c.b16 %v543, %v542
      %v547 = vpack.c.b16 %v545, %v544
      %vm550 = vcmask 261120
      %v552 = vsel %vm550, %v522, 0
      %v555 = vsel %vm550, %v523, 0
      %v558 = vsel %vm550, %v524, 0
      %v561 = vsel %vm550, %v525, 0
      %v564 = vsel %vm550, %v526, 0
      %v567 = vsel %vm550, %v527, 0
      %v570 = vsel %vm550, %v528, 0
      %v573 = vsel %vm550, %v529, 0
      %575 = vmatpush.bf16.msra.mxu0 0
      %576 = vmatpush.bf16.msra.mxu0 0
      %577 = vmatpush.bf16.msra.mxu0 0
      %578 = vmatpush.bf16.msra.mxu0 0
      %579 = vmatpush.bf16.msra.mxu0 0
      %580 = vmatpush.bf16.msra.mxu0 0
      %581 = vmatpush.bf16.msra.mxu0 %v547
      %582 = vmatpush.bf16.msra.mxu0 %v546
      %583 = vmatmul.bf16.gmra.mxu0 %v552
      %v584 = vpop.f32.mrf.mxu0
      %v585 = vadd.f32 %v536, %v584
      %v586 = vpop.f32.mrf.mxu0
      %v587 = vadd.f32 %v536, %v586
      %588 = vmatmul.bf16.gmra.mxu0 %v555
      %v589 = vpop.f32.mrf.mxu0
      %v590 = vadd.f32 %v536, %v589
      %v591 = vpop.f32.mrf.mxu0
      %v592 = vadd.f32 %v536, %v591
      %593 = vmatmul.bf16.gmra.mxu0 %v558
      %v594 = vpop.f32.mrf.mxu0
      %v595 = vadd.f32 %v536, %v594
      %v596 = vpop.f32.mrf.mxu0
      %v597 = vadd.f32 %v536, %v596
      %598 = vmatmul.bf16.gmra.mxu0 %v561
      %v599 = vpop.f32.mrf.mxu0
      %v600 = vadd.f32 %v536, %v599
      %v601 = vpop.f32.mrf.mxu0
      %v602 = vadd.f32 %v536, %v601
      %603 = vmatmul.bf16.gmra.mxu0 %v564
      %v604 = vpop.f32.mrf.mxu0
      %v605 = vadd.f32 %v536, %v604
      %v606 = vpop.f32.mrf.mxu0
      %v607 = vadd.f32 %v536, %v606
      %608 = vmatmul.bf16.gmra.mxu0 %v567
      %v609 = vpop.f32.mrf.mxu0
      %v610 = vadd.f32 %v536, %v609
      %v611 = vpop.f32.mrf.mxu0
      %v612 = vadd.f32 %v536, %v611
      %613 = vmatmul.bf16.gmra.mxu0 %v570
      %v614 = vpop.f32.mrf.mxu0
      %v615 = vadd.f32 %v536, %v614
      %v616 = vpop.f32.mrf.mxu0
      %v617 = vadd.f32 %v536, %v616
      %618 = vmatmul.bf16.gmra.mxu0 %v573
      %v619 = vpop.f32.mrf.mxu0
      %v620 = vadd.f32 %v536, %v619
      %v621 = vpop.f32.mrf.mxu0
      %v622 = vadd.f32 %v536, %v621
      %623 = vdwg.mxu0
      %v624 = vld [vmem:[%s5] sm:$0x7]
      %v625 = vtanh.pop %v585
      %v626 = vtanh.pop %v587
      %v627 = vtanh.pop %v590
      %v628 = vtanh.pop %v592
      %v629 = vtanh.pop %v595
      %v630 = vtanh.pop %v597
      %v631 = vtanh.pop %v600
      %v632 = vtanh.pop %v602
      %v633 = vtanh.pop %v605
      %v634 = vtanh.pop %v607
      %v635 = vtanh.pop %v610
      %v636 = vtanh.pop %v612
      %v637 = vtanh.pop %v615
      %v638 = vtanh.pop %v617
      %v639 = vtanh.pop %v620
      %v640 = vtanh.pop %v622
      %v641 = vperm.slane %v624, 0
      %v642 = vmul.f32 %v625, %v641
      %v643 = vmul.f32 %v626, %v641
      %v644 = vmul.f32 %v627, %v641
      %v645 = vmul.f32 %v628, %v641
      %v646 = vmul.f32 %v629, %v641
      %v647 = vmul.f32 %v630, %v641
      %v648 = vmul.f32 %v631, %v641
      %v649 = vmul.f32 %v632, %v641
      %v650 = vmul.f32 %v633, %v641
      %v651 = vmul.f32 %v634, %v641
      %v652 = vmul.f32 %v635, %v641
      %v653 = vmul.f32 %v636, %v641
      %v654 = vmul.f32 %v637, %v641
      %v655 = vmul.f32 %v638, %v641
      %v656 = vmul.f32 %v639, %v641
      %v657 = vmul.f32 %v640, %v641
      %v658 = vperm.slane %v624, 1
      %v659 = vsub.f32 %v642, %v658
      %v660 = vsub.f32 %v643, %v658
      %v661 = vsub.f32 %v644, %v658
      %v662 = vsub.f32 %v645, %v658
      %v663 = vsub.f32 %v646, %v658
      %v664 = vsub.f32 %v647, %v658
      %v665 = vsub.f32 %v648, %v658
      %v666 = vsub.f32 %v649, %v658
      %v667 = vsub.f32 %v650, %v658
      %v668 = vsub.f32 %v651, %v658
      %v669 = vsub.f32 %v652, %v658
      %v670 = vsub.f32 %v653, %v658
      %v671 = vsub.f32 %v654, %v658
      %v672 = vsub.f32 %v655, %v658
      %v673 = vsub.f32 %v656, %v658
      %v674 = vsub.f32 %v657, %v658
      %v675 = vround.ne.pseudo %v659
      %v676 = vround.ne.pseudo %v660
      %v677 = vround.ne.pseudo %v661
      %v678 = vround.ne.pseudo %v662
      %v679 = vround.ne.pseudo %v663
      %v680 = vround.ne.pseudo %v664
      %v681 = vround.ne.pseudo %v665
      %v682 = vround.ne.pseudo %v666
      %v683 = vround.ne.pseudo %v667
      %v684 = vround.ne.pseudo %v668
      %v685 = vround.ne.pseudo %v669
      %v686 = vround.ne.pseudo %v670
      %v687 = vround.ne.pseudo %v671
      %v688 = vround.ne.pseudo %v672
      %v689 = vround.ne.pseudo %v673
      %v690 = vround.ne.pseudo %v674
      %v691 = vperm.slane %v624, 2
      %v692 = vmul.f32 %v675, %v691
      %v693 = vmul.f32 %v676, %v691
      %v694 = vmul.f32 %v677, %v691
      %v695 = vmul.f32 %v678, %v691
      %v696 = vmul.f32 %v679, %v691
      %v697 = vmul.f32 %v680, %v691
      %v698 = vmul.f32 %v681, %v691
      %v699 = vmul.f32 %v682, %v691
      %v700 = vmul.f32 %v683, %v691
      %v701 = vmul.f32 %v684, %v691
      %v702 = vmul.f32 %v685, %v691
      %v703 = vmul.f32 %v686, %v691
      %v704 = vmul.f32 %v687, %v691
      %v705 = vmul.f32 %v688, %v691
      %v706 = vmul.f32 %v689, %v691
      %v707 = vmul.f32 %v690, %v691
      %v708 = vpack.c.bf16 %v676, %v675
      %v709 = vpack.c.bf16 %v678, %v677
      %v710 = vpack.c.bf16 %v680, %v679
      %v711 = vpack.c.bf16 %v682, %v681
      %v712 = vpack.c.bf16 %v684, %v683
      %v713 = vpack.c.bf16 %v686, %v685
      %v714 = vpack.c.bf16 %v688, %v687
      %v715 = vpack.c.bf16 %v690, %v689
      %v716 = vld [vmem:[%s6] sm:$0xf]
      %v717 = vld [vmem:[%s6 + $0x4] sm:$0xf]
      %v718 = vld [vmem:[%s6 + $0x8] sm:$0xf]
      %v719 = vld [vmem:[%s6 + $0xc] sm:$0xf]
      %v720 = vld [vmem:[%s6 + $0x10] sm:$0xf]
      %v721 = vld [vmem:[%s6 + $0x14] sm:$0xf]
      %v722 = vld [vmem:[%s6 + $0x18] sm:$0xf]
      %v723 = vld [vmem:[%s6 + $0x1c] sm:$0xf]
      %v724 = vld [vmem:[%s6 + $0x20] sm:$0xf]
      %v725 = vld [vmem:[%s6 + $0x24] sm:$0xf]
      %v726 = vld [vmem:[%s6 + $0x28] sm:$0xf]
      %v727 = vld [vmem:[%s6 + $0x2c] sm:$0xf]
      %v728 = vld [vmem:[%s6 + $0x30] sm:$0xf]
      %v729 = vld [vmem:[%s6 + $0x34] sm:$0xf]
      %v730 = vld [vmem:[%s6 + $0x38] sm:$0xf]
      %v731 = vld [vmem:[%s6 + $0x3c] sm:$0xf]
      %v732 = vld [vmem:[%s7] sm:$0x1]
      %v734 = vperm.slane %v732, 0
      %v752 = vunpack.c.l.b16 %v716
      %v753 = vunpack.c.l.b16 %v717
      %v754 = vunpack.c.l.b16 %v718
      %v755 = vunpack.c.l.b16 %v719
      %v756 = vunpack.c.l.b16 %v720
      %v757 = vunpack.c.l.b16 %v721
      %v758 = vunpack.c.l.b16 %v722
      %v759 = vunpack.c.l.b16 %v723
      %v760 = vunpack.c.l.b16 %v724
      %v761 = vunpack.c.l.b16 %v725
      %v762 = vunpack.c.l.b16 %v726
      %v763 = vunpack.c.l.b16 %v727
      %v764 = vunpack.c.l.b16 %v728
      %v765 = vunpack.c.l.b16 %v729
      %v766 = vunpack.c.l.b16 %v730
      %v767 = vunpack.c.l.b16 %v731
      %v768 = vpack.c.b16 %v753, %v752
      %v769 = vpack.c.b16 %v755, %v754
      %v770 = vpack.c.b16 %v757, %v756
      %v771 = vpack.c.b16 %v759, %v758
      %v772 = vpack.c.b16 %v761, %v760
      %v773 = vpack.c.b16 %v763, %v762
      %v774 = vpack.c.b16 %v765, %v764
      %v775 = vpack.c.b16 %v767, %v766
      %784 = vmatpush.bf16.msra.mxu0 %v775
      %785 = vmatpush.bf16.msra.mxu0 %v774
      %786 = vmatpush.bf16.msra.mxu0 %v773
      %787 = vmatpush.bf16.msra.mxu0 %v772
      %788 = vmatpush.bf16.msra.mxu0 %v771
      %789 = vmatpush.bf16.msra.mxu0 %v770
      %790 = vmatpush.bf16.msra.mxu0 %v769
      %791 = vmatpush.bf16.msra.mxu0 %v768
      %792 = vmatmul.bf16.gmra.mxu0 %v708
      %v793 = vpop.f32.mrf.mxu0
      %v794 = vadd.f32 %v734, %v793
      %v795 = vpop.f32.mrf.mxu0
      %v796 = vadd.f32 %v734, %v795
      %797 = vmatmul.bf16.gmra.mxu0 %v709
      %v798 = vpop.f32.mrf.mxu0
      %v799 = vadd.f32 %v734, %v798
      %v800 = vpop.f32.mrf.mxu0
      %v801 = vadd.f32 %v734, %v800
      %802 = vmatmul.bf16.gmra.mxu0 %v710
      %v803 = vpop.f32.mrf.mxu0
      %v804 = vadd.f32 %v734, %v803
      %v805 = vpop.f32.mrf.mxu0
      %v806 = vadd.f32 %v734, %v805
      %807 = vmatmul.bf16.gmra.mxu0 %v711
      %v808 = vpop.f32.mrf.mxu0
      %v809 = vadd.f32 %v734, %v808
      %v810 = vpop.f32.mrf.mxu0
      %v811 = vadd.f32 %v734, %v810
      %812 = vmatmul.bf16.gmra.mxu0 %v712
      %v813 = vpop.f32.mrf.mxu0
      %v814 = vadd.f32 %v734, %v813
      %v815 = vpop.f32.mrf.mxu0
      %v816 = vadd.f32 %v734, %v815
      %817 = vmatmul.bf16.gmra.mxu0 %v713
      %v818 = vpop.f32.mrf.mxu0
      %v819 = vadd.f32 %v734, %v818
      %v820 = vpop.f32.mrf.mxu0
      %v821 = vadd.f32 %v734, %v820
      %822 = vmatmul.bf16.gmra.mxu0 %v714
      %v823 = vpop.f32.mrf.mxu0
      %v824 = vadd.f32 %v734, %v823
      %v825 = vpop.f32.mrf.mxu0
      %v826 = vadd.f32 %v734, %v825
      %827 = vmatmul.bf16.gmra.mxu0 %v715
      %v828 = vpop.f32.mrf.mxu0
      %v829 = vadd.f32 %v734, %v828
      %v830 = vpop.f32.mrf.mxu0
      %v831 = vadd.f32 %v734, %v830
      %832 = vdwg.mxu0
      %v833 = vmax.f32 %v794, 0.0
      %v834 = vmax.f32 %v796, 0.0
      %v835 = vmax.f32 %v799, 0.0
      %v836 = vmax.f32 %v801, 0.0
      %v837 = vmax.f32 %v804, 0.0
      %v838 = vmax.f32 %v806, 0.0
      %v839 = vmax.f32 %v809, 0.0
      %v840 = vmax.f32 %v811, 0.0
      %v841 = vmax.f32 %v814, 0.0
      %v842 = vmax.f32 %v816, 0.0
      %v843 = vmax.f32 %v819, 0.0
      %v844 = vmax.f32 %v821, 0.0
      %v845 = vmax.f32 %v824, 0.0
      %v846 = vmax.f32 %v826, 0.0
      %v847 = vmax.f32 %v829, 0.0
      %v848 = vmax.f32 %v831, 0.0
      %v849 = vpack.c.bf16 %v834, %v833
      %v850 = vpack.c.bf16 %v836, %v835
      %v851 = vpack.c.bf16 %v838, %v837
      %v852 = vpack.c.bf16 %v840, %v839
      %v853 = vpack.c.bf16 %v842, %v841
      %v854 = vpack.c.bf16 %v844, %v843
      %v855 = vpack.c.bf16 %v846, %v845
      %v856 = vpack.c.bf16 %v848, %v847
      %v857 = vld [vmem:[%s8] sm:$0xf]
      %v858 = vld [vmem:[%s8 + $0x4] sm:$0xf]
      %v859 = vld [vmem:[%s8 + $0x8] sm:$0xf]
      %v860 = vld [vmem:[%s8 + $0xc] sm:$0xf]
      %v861 = vld [vmem:[%s8 + $0x10] sm:$0xf]
      %v862 = vld [vmem:[%s8 + $0x14] sm:$0xf]
      %v863 = vld [vmem:[%s8 + $0x18] sm:$0xf]
      %v864 = vld [vmem:[%s8 + $0x1c] sm:$0xf]
      %v865 = vld [vmem:[%s8 + $0x20] sm:$0xf]
      %v866 = vld [vmem:[%s8 + $0x24] sm:$0xf]
      %v867 = vld [vmem:[%s8 + $0x28] sm:$0xf]
      %v868 = vld [vmem:[%s8 + $0x2c] sm:$0xf]
      %v869 = vld [vmem:[%s8 + $0x30] sm:$0xf]
      %v870 = vld [vmem:[%s8 + $0x34] sm:$0xf]
      %v871 = vld [vmem:[%s8 + $0x38] sm:$0xf]
      %v872 = vld [vmem:[%s8 + $0x3c] sm:$0xf]
      %v873 = vld [vmem:[%s9] sm:$0x1]
      %v875 = vperm.slane %v873, 0
      %v893 = vunpack.c.l.b16 %v857
      %v894 = vunpack.c.l.b16 %v858
      %v895 = vunpack.c.l.b16 %v859
      %v896 = vunpack.c.l.b16 %v860
      %v897 = vunpack.c.l.b16 %v861
      %v898 = vunpack.c.l.b16 %v862
      %v899 = vunpack.c.l.b16 %v863
      %v900 = vunpack.c.l.b16 %v864
      %v901 = vunpack.c.l.b16 %v865
      %v902 = vunpack.c.l.b16 %v866
      %v903 = vunpack.c.l.b16 %v867
      %v904 = vunpack.c.l.b16 %v868
      %v905 = vunpack.c.l.b16 %v869
      %v906 = vunpack.c.l.b16 %v870
      %v907 = vunpack.c.l.b16 %v871
      %v908 = vunpack.c.l.b16 %v872
      %v909 = vpack.c.b16 %v894, %v893
      %v910 = vpack.c.b16 %v896, %v895
      %v911 = vpack.c.b16 %v898, %v897
      %v912 = vpack.c.b16 %v900, %v899
      %v913 = vpack.c.b16 %v902, %v901
      %v914 = vpack.c.b16 %v904, %v903
      %v915 = vpack.c.b16 %v906, %v905
      %v916 = vpack.c.b16 %v908, %v907
      %925 = vmatpush.bf16.msra.mxu0 %v916
      %926 = vmatpush.bf16.msra.mxu0 %v915
      %927 = vmatpush.bf16.msra.mxu0 %v914
      %928 = vmatpush.bf16.msra.mxu0 %v913
      %929 = vmatpush.bf16.msra.mxu0 %v912
      %930 = vmatpush.bf16.msra.mxu0 %v911
      %931 = vmatpush.bf16.msra.mxu0 %v910
      %932 = vmatpush.bf16.msra.mxu0 %v909
      %933 = vmatmul.bf16.gmra.mxu0 %v849
      %v934 = vpop.f32.mrf.mxu0
      %v935 = vadd.f32 %v875, %v934
      %v936 = vpop.f32.mrf.mxu0
      %v937 = vadd.f32 %v875, %v936
      %938 = vmatmul.bf16.gmra.mxu0 %v850
      %v939 = vpop.f32.mrf.mxu0
      %v940 = vadd.f32 %v875, %v939
      %v941 = vpop.f32.mrf.mxu0
      %v942 = vadd.f32 %v875, %v941
      %943 = vmatmul.bf16.gmra.mxu0 %v851
      %v944 = vpop.f32.mrf.mxu0
      %v945 = vadd.f32 %v875, %v944
      %v946 = vpop.f32.mrf.mxu0
      %v947 = vadd.f32 %v875, %v946
      %948 = vmatmul.bf16.gmra.mxu0 %v852
      %v949 = vpop.f32.mrf.mxu0
      %v950 = vadd.f32 %v875, %v949
      %v951 = vpop.f32.mrf.mxu0
      %v952 = vadd.f32 %v875, %v951
      %953 = vmatmul.bf16.gmra.mxu0 %v853
      %v954 = vpop.f32.mrf.mxu0
      %v955 = vadd.f32 %v875, %v954
      %v956 = vpop.f32.mrf.mxu0
      %v957 = vadd.f32 %v875, %v956
      %958 = vmatmul.bf16.gmra.mxu0 %v854
      %v959 = vpop.f32.mrf.mxu0
      %v960 = vadd.f32 %v875, %v959
      %v961 = vpop.f32.mrf.mxu0
      %v962 = vadd.f32 %v875, %v961
      %963 = vmatmul.bf16.gmra.mxu0 %v855
      %v964 = vpop.f32.mrf.mxu0
      %v965 = vadd.f32 %v875, %v964
      %v966 = vpop.f32.mrf.mxu0
      %v967 = vadd.f32 %v875, %v966
      %968 = vmatmul.bf16.gmra.mxu0 %v856
      %v969 = vpop.f32.mrf.mxu0
      %v970 = vadd.f32 %v875, %v969
      %v971 = vpop.f32.mrf.mxu0
      %v972 = vadd.f32 %v875, %v971
      %973 = vdwg.mxu0
      %v974 = vadd.f32 %v935, %v692
      %v975 = vadd.f32 %v937, %v693
      %v976 = vadd.f32 %v940, %v694
      %v977 = vadd.f32 %v942, %v695
      %v978 = vadd.f32 %v945, %v696
      %v979 = vadd.f32 %v947, %v697
      %v980 = vadd.f32 %v950, %v698
      %v981 = vadd.f32 %v952, %v699
      %v982 = vadd.f32 %v955, %v700
      %v983 = vadd.f32 %v957, %v701
      %v984 = vadd.f32 %v960, %v702
      %v985 = vadd.f32 %v962, %v703
      %v986 = vadd.f32 %v965, %v704
      %v987 = vadd.f32 %v967, %v705
      %v988 = vadd.f32 %v970, %v706
      %v989 = vadd.f32 %v972, %v707
      %990 = vst [vmem:[%s361] sm:$0xff] %v974
      %991 = vst [vmem:[%s361 + $0x8] sm:$0xff] %v975
      %992 = vst [vmem:[%s361 + $0x10] sm:$0xff] %v976
      %993 = vst [vmem:[%s361 + $0x18] sm:$0xff] %v977
      %994 = vst [vmem:[%s361 + $0x20] sm:$0xff] %v978
      %995 = vst [vmem:[%s361 + $0x28] sm:$0xff] %v979
      %996 = vst [vmem:[%s361 + $0x30] sm:$0xff] %v980
      %997 = vst [vmem:[%s361 + $0x38] sm:$0xff] %v981
      %998 = vst [vmem:[%s361 + $0x40] sm:$0xff] %v982
      %999 = vst [vmem:[%s361 + $0x48] sm:$0xff] %v983
      %1000 = vst [vmem:[%s361 + $0x50] sm:$0xff] %v984
      %1001 = vst [vmem:[%s361 + $0x58] sm:$0xff] %v985
      %1002 = vst [vmem:[%s361 + $0x60] sm:$0xff] %v986
      %1003 = vst [vmem:[%s361 + $0x68] sm:$0xff] %v987
      %1004 = vst [vmem:[%s361 + $0x70] sm:$0xff] %v988
      %1005 = vst [vmem:[%s361 + $0x78] sm:$0xff] %v989
      %s1006 = smul.u32 16, %s21
      %p1007 = scmp.lt.s32.totalorder %s1006, 31
      %s1008 = scalar_select %p1007, %s1006, 31
      %s1009 = smul.addr %s1008, 8
      %s1010 = scalar_lea.vmem %s10, %s1009
      // Predicated region
      $region61: #{_lambda_.1} parent=59 // pred_check
        %p1011 = pneg %p254
      $region62: #{_lambda_.1} parent=59 // pred_check_branch
        %1013 = sbr.rel (%p1011) target = $region64
      $region63: #{_lambda_.1} parent=59 // pred_region
        %s1014 = smul.u32 16, %s21
      $region64: #{_lambda_.1} parent=59 // pred_fallthru
        _
    $region60: #{_lambda_.1} parent=5 // pred_fallthru
      _
    %p1015 = scmp.le.s32.totalorder 2, %s16
    // Predicated region
    $region65: #{_lambda_.1} parent=5 // pred_check
      %p1016 = pneg %p1015
    $region66: #{_lambda_.1} parent=5 // pred_check_branch
      %1018 = sbr.rel (%p1016) target = $region68
    $region67: #{_lambda_.1} parent=5 // pred_region
      %s1019 = ssub.s32 %s16, 2
      // Predicated region
      $region69: #{_lambda_.1} parent=67 // pred_check
        %p1020 = pneg %p260
      $region70: #{_lambda_.1} parent=67 // pred_check_branch
        %1022 = sbr.rel (%p1020) target = $region72
      $region71: #{_lambda_.1} parent=67 // pred_region
        %s1023 = smul.u32 16, %s22
        %p1024 = scmp.lt.s32.totalorder %s1023, 31
        %s1025 = scalar_select %p1024, %s1023, 31
        %s1026 = smul.addr %s1025, 8
        %s1027 = scalar_lea.vmem %s10, %s1026
      $region72: #{_lambda_.1} parent=67 // pred_fallthru
        _
    $region68: #{_lambda_.1} parent=5 // pred_fallthru
      _
  $region6: #{_lambda_.1} parent=0 // loop_footer
    %s20 = sadd.s32 1, %s16
  $region7: #{_lambda_.1} parent=0 // loop_footer_branch
    %15 = sbr.rel target = $region3
  $region8: #{_lambda_.1} parent=0 // loop_exit
    _

</llo_original>
